<compile_context>
chip_gen: v7x
topology: tpu7x:2x2x1
jax: 0.10.0
libtpu: 0.0.40
codegen_flags: <defaults>
</compile_context>

<pallas_src>
import jax
import jax.numpy as jnp
from jax.experimental import pallas as pl
from jax.experimental.pallas import tpu as pltpu

MOUTH_LO, MOUTH_HI = 48, 61  # regions = {'mouth': list(range(48, 61))}

# cv2 BGR2GRAY fixed-point coefficients (Q14): Y = 0.299 R + 0.587 G + 0.114 B
_R_COEF, _G_COEF, _B_COEF, _HALF, _SHIFT = 4899, 9617, 1868, 8192, 14


def _gray_kernel(img_ref, gray_ref):
    """img_ref: (1, 3, rows_tile, 128) f32 in [0,1]; gray_ref: (1, rows_tile, 128) u8."""

    def to_u8(x):
        # (images * 255).astype(np.uint8) — truncation toward zero on [0, 1] inputs.
        return jnp.floor(jnp.clip(x * 255.0, 0.0, 255.0)).astype(jnp.int32)

    r = to_u8(img_ref[0, 0])
    g = to_u8(img_ref[0, 1])
    b = to_u8(img_ref[0, 2])
    # RGB->BGR is a channel permutation that cv2.BGR2GRAY undoes; apply the exact
    # OpenCV integer path directly on (r, g, b).
    gray = (r * _R_COEF + g * _G_COEF + b * _B_COEF + _HALF) >> _SHIFT
    gray_ref[0] = gray.astype(jnp.uint8)
    # TODO(synk): dlib.get_frontal_face_detector / dlib.shape_predictor (HOG+SVM
    # cascade and regression-tree ensemble consuming `gray`) have no Pallas
    # equivalent; landmark points are supplied to the wrapper instead.


def landmark_detector_forward(images, landmarks, *, max_rows_per_step=2048):
    """images: (B, 3, H, W) float32 in [0,1]; landmarks: (B, 68, 2) int32.

    Returns (boxes, gray):
      boxes: (B, 1, 4) int32 — the torch module's return value
             (one 'mouth' region per image, [x, y, x+w, y+h]).
      gray : (B, H, W) uint8 — cv2-equivalent grayscale preprocessing output.
    """
    B, C, H, W = images.shape
    assert C == 3
    assert max_rows_per_step % 32 == 0  # keeps f32 (8,128) / u8 (32,128) tiling happy

    # ---- lane/sublane-dense tiling of the flattened spatial axis ----
    HW = H * W
    R = pl.cdiv(HW, 128)                     # rows of 128 lanes per image
    if R <= max_rows_per_step:
        rows_tile, n_tiles = R, 1            # single block spans the full (R, 128) slab
    else:
        n_tiles = pl.cdiv(R, max_rows_per_step)
        # Spread rows evenly over tiles (rounded up to a multiple of 32) so the
        # tail tile is not nearly empty — minimizes padded DMA/compute work.
        rows_tile = ((pl.cdiv(R, n_tiles) + 31) // 32) * 32
    Rp = n_tiles * rows_tile
    HWp = Rp * 128

    flat = images.reshape(B, 3, HW)
    if HWp != HW:
        flat = jnp.pad(flat, ((0, 0), (0, 0), (0, HWp - HW)))
    img4 = flat.reshape(B, 3, Rp, 128)

    # Advisory cost hint: mem-bound streaming op (12 B read + 1 B written / pixel).
    cost = pl.CostEstimate(
        flops=10 * B * HWp,
        transcendentals=0,
        bytes_accessed=B * 3 * HWp * 4 + B * HWp,
    )

    gray_p = pl.pallas_call(
        _gray_kernel,
        out_shape=jax.ShapeDtypeStruct((B, Rp, 128), jnp.uint8),
        grid_spec=pltpu.PrefetchScalarGridSpec(
            num_scalar_prefetch=0,
            grid=(B, n_tiles),
            in_specs=[
                pl.BlockSpec((1, 3, rows_tile, 128), lambda b, t: (b, 0, t, 0)),
            ],
            out_specs=pl.BlockSpec((1, rows_tile, 128), lambda b, t: (b, t, 0)),
        ),
        compiler_params=pltpu.CompilerParams(
            dimension_semantics=("parallel", "parallel"),
            vmem_limit_bytes=32 * 1024 * 1024,
        ),
        cost_estimate=cost,
    )(img4)
    gray = gray_p.reshape(B, HWp)[:, :HW].reshape(B, H, W)

    # ---- mouth bounding box (cv2.boundingRect of points[48:61]) in plain jnp ----
    # B x 13 x 2 integer reduction: far too small to justify kernel DMAs / masked stores.
    pts = landmarks.astype(jnp.int32)
    mouth = pts[:, MOUTH_LO:MOUTH_HI, :]                      # (B, 13, 2)
    x_min = jnp.min(mouth[..., 0], axis=1)
    y_min = jnp.min(mouth[..., 1], axis=1)
    x_max = jnp.max(mouth[..., 0], axis=1) + 1                # x + w
    y_max = jnp.max(mouth[..., 1], axis=1) + 1                # y + h
    boxes = jnp.stack([x_min, y_min, x_max, y_max], axis=-1)[:, None, :].astype(jnp.int32)
    return boxes, gray


if __name__ == "__main__":
    key = jax.random.PRNGKey(0)
    k_img, k_pts = jax.random.split(key)

    B, C, H, W = 2, 3, 16, 16
    images = jax.random.uniform(k_img, (B, C, H, W), dtype=jnp.float32)
    # Deterministic stand-in for the dlib 68-landmark predictor output
    # (integer pixel coordinates inside the image).
    landmarks = jax.random.randint(k_pts, (B, 68, 2), 0, W, dtype=jnp.int32)

    boxes, gray = landmark_detector_forward(images, landmarks)
    jax.block_until_ready((boxes, gray))

    # ---- reference checks in plain JAX ----
    q = jnp.floor(jnp.clip(images * 255.0, 0.0, 255.0)).astype(jnp.int32)
    ref_gray = (
        (q[:, 0] * _R_COEF + q[:, 1] * _G_COEF + q[:, 2] * _B_COEF + _HALF) >> _SHIFT
    ).astype(jnp.uint8)

    mouth = landmarks[:, MOUTH_LO:MOUTH_HI, :]
    ref_boxes = jnp.stack(
        [
            jnp.min(mouth[..., 0], axis=1),
            jnp.min(mouth[..., 1], axis=1),
            jnp.max(mouth[..., 0], axis=1) + 1,
            jnp.max(mouth[..., 1], axis=1) + 1,
        ],
        axis=-1,
    )[:, None, :].astype(jnp.int32)

    assert boxes.shape == (B, 1, 4) and boxes.dtype == jnp.int32
    assert gray.shape == (B, H, W) and gray.dtype == jnp.uint8
    assert bool(jnp.all(boxes == ref_boxes))
    assert bool(jnp.all(gray == ref_gray))

    print("KERNEL_OK")
</pallas_src>

<mosaic_0001>
module attributes {stable_mosaic.version = 11 : i64} {
  func.func @_gray_kernel(%arg0: i32, %arg1: i32, %arg2: memref<1x3x2x128xf32, #tpu.memory_space<vmem>>, %arg3: memref<1x2x128xi8, #tpu.memory_space<vmem>>) attributes {dimension_semantics = [#tpu.dimension_semantics<parallel>, #tpu.dimension_semantics<parallel>], iteration_bounds = array<i64: 2, 1>, scalar_prefetch = 0 : i64, scratch_operands = 0 : i64, tpu.core_type = #tpu.core_type<tc>, window_params = [{transform_indices = @transform_0, window_bounds = array<i64: 1, 3, 2, 128>}, {transform_indices = @transform_1, window_bounds = array<i64: 1, 2, 128>}]} {
    %c0 = arith.constant 0 : index
    %c0_0 = arith.constant 0 : index
    %c0_1 = arith.constant 0 : index
    %c0_2 = arith.constant 0 : index
    %0 = vector.load %arg2[%c0, %c0_0, %c0_1, %c0_2] : memref<1x3x2x128xf32, #tpu.memory_space<vmem>>, vector<1x1x2x128xf32>
    %1 = vector.shape_cast %0 : vector<1x1x2x128xf32> to vector<2x128xf32>
    %cst = arith.constant 2.550000e+02 : f32
    %2 = vector.broadcast %cst : f32 to vector<2x128xf32>
    %3 = arith.mulf %1, %2 : vector<2x128xf32>
    %cst_3 = arith.constant 0.000000e+00 : f32
    %cst_4 = arith.constant 2.550000e+02 : f32
    %4 = vector.broadcast %cst_3 : f32 to vector<2x128xf32>
    %5 = arith.maximumf %4, %3 : vector<2x128xf32>
    %6 = vector.broadcast %cst_4 : f32 to vector<2x128xf32>
    %7 = arith.minimumf %6, %5 : vector<2x128xf32>
    %8 = math.floor %7 : vector<2x128xf32>
    %9 = arith.fptosi %8 : vector<2x128xf32> to vector<2x128xi32>
    %c0_5 = arith.constant 0 : index
    %c1 = arith.constant 1 : index
    %c0_6 = arith.constant 0 : index
    %c0_7 = arith.constant 0 : index
    %10 = vector.load %arg2[%c0_5, %c1, %c0_6, %c0_7] : memref<1x3x2x128xf32, #tpu.memory_space<vmem>>, vector<1x1x2x128xf32>
    %11 = vector.shape_cast %10 : vector<1x1x2x128xf32> to vector<2x128xf32>
    %cst_8 = arith.constant 2.550000e+02 : f32
    %12 = vector.broadcast %cst_8 : f32 to vector<2x128xf32>
    %13 = arith.mulf %11, %12 : vector<2x128xf32>
    %cst_9 = arith.constant 0.000000e+00 : f32
    %cst_10 = arith.constant 2.550000e+02 : f32
    %14 = vector.broadcast %cst_9 : f32 to vector<2x128xf32>
    %15 = arith.maximumf %14, %13 : vector<2x128xf32>
    %16 = vector.broadcast %cst_10 : f32 to vector<2x128xf32>
    %17 = arith.minimumf %16, %15 : vector<2x128xf32>
    %18 = math.floor %17 : vector<2x128xf32>
    %19 = arith.fptosi %18 : vector<2x128xf32> to vector<2x128xi32>
    %c0_11 = arith.constant 0 : index
    %c2 = arith.constant 2 : index
    %c0_12 = arith.constant 0 : index
    %c0_13 = arith.constant 0 : index
    %20 = vector.load %arg2[%c0_11, %c2, %c0_12, %c0_13] : memref<1x3x2x128xf32, #tpu.memory_space<vmem>>, vector<1x1x2x128xf32>
    %21 = vector.shape_cast %20 : vector<1x1x2x128xf32> to vector<2x128xf32>
    %cst_14 = arith.constant 2.550000e+02 : f32
    %22 = vector.broadcast %cst_14 : f32 to vector<2x128xf32>
    %23 = arith.mulf %21, %22 : vector<2x128xf32>
    %cst_15 = arith.constant 0.000000e+00 : f32
    %cst_16 = arith.constant 2.550000e+02 : f32
    %24 = vector.broadcast %cst_15 : f32 to vector<2x128xf32>
    %25 = arith.maximumf %24, %23 : vector<2x128xf32>
    %26 = vector.broadcast %cst_16 : f32 to vector<2x128xf32>
    %27 = arith.minimumf %26, %25 : vector<2x128xf32>
    %28 = math.floor %27 : vector<2x128xf32>
    %29 = arith.fptosi %28 : vector<2x128xf32> to vector<2x128xi32>
    %c4899_i32 = arith.constant 4899 : i32
    %30 = vector.broadcast %c4899_i32 : i32 to vector<2x128xi32>
    %31 = arith.muli %9, %30 : vector<2x128xi32>
    %c9617_i32 = arith.constant 9617 : i32
    %32 = vector.broadcast %c9617_i32 : i32 to vector<2x128xi32>
    %33 = arith.muli %19, %32 : vector<2x128xi32>
    %34 = arith.addi %31, %33 : vector<2x128xi32>
    %c1868_i32 = arith.constant 1868 : i32
    %35 = vector.broadcast %c1868_i32 : i32 to vector<2x128xi32>
    %36 = arith.muli %29, %35 : vector<2x128xi32>
    %37 = arith.addi %34, %36 : vector<2x128xi32>
    %c8192_i32 = arith.constant 8192 : i32
    %38 = vector.broadcast %c8192_i32 : i32 to vector<2x128xi32>
    %39 = arith.addi %37, %38 : vector<2x128xi32>
    %c14_i32 = arith.constant 14 : i32
    %40 = vector.broadcast %c14_i32 : i32 to vector<2x128xi32>
    %41 = arith.shrsi %39, %40 : vector<2x128xi32>
    %42 = arith.trunci %41 : vector<2x128xi32> to vector<2x128xi8>
    %c0_17 = arith.constant 0 : index
    %c0_18 = arith.constant 0 : index
    %c0_19 = arith.constant 0 : index
    %43 = vector.load %arg3[%c0_17, %c0_18, %c0_19] : memref<1x2x128xi8, #tpu.memory_space<vmem>>, vector<1x2x128xi8>
    %44 = vector.shape_cast %43 : vector<1x2x128xi8> to vector<2x128xi8>
    %45 = vector.shape_cast %42 : vector<2x128xi8> to vector<1x2x128xi8>
    tpu.vector_store %arg3[%c0_17, %c0_18, %c0_19], %45 {strides = array<i32>} : memref<1x2x128xi8, #tpu.memory_space<vmem>>, vector<1x2x128xi8>,
    return
  }
  func.func @transform_0(%arg0: i32, %arg1: i32) -> (i32, i32, i32, i32) {
    %c0_i32 = arith.constant 0 : i32
    %c0_i32_0 = arith.constant 0 : i32
    %c0_i32_1 = arith.constant 0 : i32
    return %arg0, %c0_i32, %arg1, %c0_i32_0 : i32, i32, i32, i32
  }
  func.func @transform_1(%arg0: i32, %arg1: i32) -> (i32, i32, i32) {
    %c0_i32 = arith.constant 0 : i32
    %c0_i32_0 = arith.constant 0 : i32
    return %arg0, %arg1, %c0_i32 : i32, i32, i32
  }
}

</mosaic_0001>

<llo_original>
// kernel: tpu_custom_call.1
$region0: #{tpu_custom_call.1}
  #allocation0 [shape = 'u32[]', space=smem, size = 0x4, offset = 0x4, fixed_abs, tag = 'smem constant byte address 0x4 - core index']
  #allocation1 [shape = 'u32[144,128]{1,0:T(1,128)}', space=vmem, size = 0x12000, scoped, tag = 'internal scratch']
  %s0 = inlined_call_operand.hbm [shape: f32[2,3,2,128], index: 0, kind: input, shape index: {}]
  %s1 = inlined_call_operand.hbm [shape: u8[2,2,128], index: 1, kind: output, shape index: {}]
  %s2 = sld [smem:[#allocation0]]
  $region41: #{tpu_custom_call.1} parent=0
    _
  %s4 = ssub.s32 1, %s2
  %s5 = scalar_select 0, %s4, %s2
  $region1: #{tpu_custom_call.1} parent=0
    #allocation2 [shape = 'u8[6144]{0}', space=vmem, size = 0x1800, scoped, tag = 'input window, operand 0']
    #allocation3 [shape = 's32[2]{0}', space=sflag, size = 0x8, scoped, tag = 'scoped memory for tpu_custom_call.1']
    #allocation4 [shape = 's32[2]{0}', space=sflag, size = 0x8, scoped, tag = 'scoped memory for tpu_custom_call.1']
    #allocation5 [shape = 'u8[1024]{0}', space=vmem, size = 0x400, scoped, tag = 'output window, operand 0']
    %6 = vsyncpa [#allocation3], 0
    %s7 = scalar_lea.sflag [#allocation3], 1
    %8 = vsyncpa %s7, 0
    %9 = vsyncpa [#allocation4], 0
    %s10 = scalar_lea.sflag [#allocation4], 1
    %11 = vsyncpa %s10, 0
    loop: start=0, step=1, limit=4
    $region2: #{tpu_custom_call.1} parent=1 // loop_pre_header
      _
    $region3: #{tpu_custom_call.1} parent=1 // loop_header
      %s13 = sphi 0, %s17
      %p14 = scmp.ge.s32.totalorder %s13, 4
      %s20 = sphi 0, %s32
      %s21 = sphi 0, %s28
      %s22 = sphi 0, %s20
      %s23 = sphi 0, %s21
      %s24 = sphi 0, %s22
      %s25 = sphi 0, %s23
      %s37 = sphi 0, %s39
      %s40 = sphi 0, %s37
      %s41 = sphi 0, %s40
      %s57 = sphi 0, %s41
      %s65 = sphi 0, %s67
      %s68 = sphi 0, %s65
      %s69 = sphi 0, %s68
      %s85 = sphi 0, %s69
    $region4: #{tpu_custom_call.1} parent=1 // loop_header_branch
      %16 = sbr.rel (%p14) target = $region8
    $region5: #{tpu_custom_call.1} parent=1 // loop_body
      %s18 = ssub.s32 %s13, 1
      %s19 = ssub.s32 %s13, 2
      %s26 = sadd.s32 1, %s21
      %p27 = scmp.ge.s32.totalorder %s26, 1
      %s28 = scalar_select %p27, 0, %s26
      %s29 = sadd.s32 1, %s20
      %s30 = scalar_select %p27, %s29, %s20
      %p31 = scmp.ge.s32.totalorder %s30, 2
      %s32 = scalar_select %p31, 0, %s30
      %s33 = ssub.s32 %s20, %s32
      %s34 = ssub.s32 %s21, %s28
      %s35 = sor.u32 %s33, %s34
      %p36 = scmp.eq.s32.totalorder %s35, 0
      %s38 = sadd.s32 %s37, 1
      %s39 = scalar_select %p36, %s37, %s38
      %p42 = pneg %p36
      %p43 = scmp.eq.s32.totalorder %s13, 1
      %p44 = por %p42, %p43
      %p45 = scmp.ne.s32.totalorder %s37, %s40
      %p46 = scmp.eq.s32.totalorder %s13, 0
      %p47 = por %p45, %p46
      %p48 = scmp.ne.s32.totalorder %s37, %s40
      %p49 = scmp.eq.s32.totalorder %s18, 1
      %p50 = por %p48, %p49
      %p51 = scmp.ne.s32.totalorder %s40, %s41
      %p52 = scmp.eq.s32.totalorder %s18, 0
      %p53 = por %p51, %p52
      %p54 = scmp.ne.s32.totalorder %s40, %s41
      %p55 = scmp.eq.s32.totalorder %s19, 1
      %p56 = por %p54, %p55
      %p58 = scmp.ne.s32.totalorder %s41, %s57
      %p59 = scmp.eq.s32.totalorder %s19, 0
      %p60 = por %p58, %p59
      %s61 = ssub.s32 %s20, %s32
      %s62 = ssub.s32 %s21, %s28
      %s63 = sor.u32 %s61, %s62
      %p64 = scmp.eq.s32.totalorder %s63, 0
      %s66 = sadd.s32 %s65, 1
      %s67 = scalar_select %p64, %s65, %s66
      %p70 = pneg %p64
      %p71 = scmp.eq.s32.totalorder %s13, 1
      %p72 = por %p70, %p71
      %p73 = scmp.ne.s32.totalorder %s65, %s68
      %p74 = scmp.eq.s32.totalorder %s13, 0
      %p75 = por %p73, %p74
      %p76 = scmp.ne.s32.totalorder %s65, %s68
      %p77 = scmp.eq.s32.totalorder %s18, 1
      %p78 = por %p76, %p77
      %p79 = scmp.ne.s32.totalorder %s68, %s69
      %p80 = scmp.eq.s32.totalorder %s18, 0
      %p81 = por %p79, %p80
      %p82 = scmp.ne.s32.totalorder %s68, %s69
      %p83 = scmp.eq.s32.totalorder %s19, 1
      %p84 = por %p82, %p83
      %p86 = scmp.ne.s32.totalorder %s69, %s85
      %p87 = scmp.eq.s32.totalorder %s19, 0
      %p88 = por %p86, %p87
      %p89 = scmp.le.s32.totalorder 1, %s13
      %p90 = scmp.lt.s32.totalorder %s13, 3
      %p91 = pnand %p89, %p90
      %p92 = pneg %p91
      // Predicated region
      $region9: #{tpu_custom_call.1} parent=5 // pred_check
        _
      $region10: #{tpu_custom_call.1} parent=5 // pred_check_branch
        %94 = sbr.rel (%p91) target = $region12
      $region11: #{tpu_custom_call.1} parent=5 // pred_region
        %s95 = ssub.s32 %s13, 1
      $region12: #{tpu_custom_call.1} parent=5 // pred_fallthru
        _
      %p96 = scmp.lt.s32.totalorder %s13, 2
      // Predicated region
      $region13: #{tpu_custom_call.1} parent=5 // pred_check
        %p97 = pneg %p96
      $region14: #{tpu_custom_call.1} parent=5 // pred_check_branch
        %99 = sbr.rel (%p97) target = $region16
      $region15: #{tpu_custom_call.1} parent=5 // pred_region
        // Predicated region
        $region17: #{tpu_custom_call.1} parent=15 // pred_check
          %p100 = pneg %p47
        $region18: #{tpu_custom_call.1} parent=15 // pred_check_branch
          %102 = sbr.rel (%p100) target = $region20
        $region19: #{tpu_custom_call.1} parent=15 // pred_region
          %s103 = sand.u32 %s37, 1
          %s104 = scalar_lea.sflag [#allocation3], %s103
          %s105 = sand.u32 %s37, 1
          %s106 = smul.addr %s105, 6
          %s107 = scalar_lea.vmem [#allocation2], %s106
          %s109 = ssub.s32 96, 96
          %110 = vsyncadd %s104, %s109
          %s111 = smul.addr %s20, 3
          %s112 = sadd.s32 %s21, %s111
          %s113 = smul.addr %s112, 32
          %s114 = scalar_lea.hbm %s0, %s113
          %s115 = sshll.u32 %s107, 4
          %s116 = int_to_ptr.vmem [resolvable:$true] %s115
          %121 = dma.hbm_to_vmem [thread:$0]  %s114, 96, %s116, %s104, 32, 32, 2
        $region20: #{tpu_custom_call.1} parent=15 // pred_fallthru
          _
      $region16: #{tpu_custom_call.1} parent=5 // pred_fallthru
        _
      %p122 = scmp.le.s32.totalorder 1, %s13
      %p123 = scmp.lt.s32.totalorder %s13, 3
      %p124 = pnand %p122, %p123
      %p125 = pneg %p124
      // Predicated region
      $region21: #{tpu_custom_call.1} parent=5 // pred_check
        _
      $region22: #{tpu_custom_call.1} parent=5 // pred_check_branch
        %127 = sbr.rel (%p124) target = $region24
      $region23: #{tpu_custom_call.1} parent=5 // pred_region
        %s128 = ssub.s32 %s13, 1
        %s129 = sand.u32 %s40, 1
        %s130 = scalar_lea.sflag [#allocation3], %s129
        %s131 = sand.u32 %s40, 1
        %s132 = smul.addr %s131, 6
        %s133 = scalar_lea.vmem [#allocation2], %s132
        // Predicated region
        $region25: #{tpu_custom_call.1} parent=23 // pred_check
          %p134 = pneg %p53
        $region26: #{tpu_custom_call.1} parent=23 // pred_check_branch
          %136 = sbr.rel (%p134) target = $region28
        $region27: #{tpu_custom_call.1} parent=23 // pred_region
          %137 = dma.done %s130, 96
        $region28: #{tpu_custom_call.1} parent=23 // pred_fallthru
          _
        %s138 = sand.u32 %s40, 1
        %s139 = scalar_lea.sflag [#allocation3], %s138
        %s140 = sand.u32 %s40, 1
        %s141 = smul.addr %s140, 6
        %s142 = scalar_lea.vmem [#allocation2], %s141
        %p143 = pneg %p53
        %p144 = pneg %p50
        %p145 = pneg %p81
        %p146 = pneg %p78
        %s147 = sand.u32 %s68, 1
        %s148 = scalar_lea.sflag [#allocation4], %s147
        %s149 = sand.u32 %s68, 1
        %s150 = scalar_lea.vmem [#allocation5], %s149
        %v151 = vld [vmem:[%s133] sm:$0x3]
        %v152 = vmul.f32 %v151, 255.0
        %v153 = vmax.f32 %v152, 0.0
        %v154 = vmin.f32 %v153, 255.0
        %v155 = vfloor.f32 %v154
        %v156 = vcvt.f32.s32.to.zero.pseudo %v155
        %s157 = scalar_lea.vmem %s133, 2 [#allocation2]
        %v158 = vld [vmem:[%s157] sm:$0x3]
        %v159 = vmul.f32 %v158, 255.0
        %v160 = vmax.f32 %v159, 0.0
        %v161 = vmin.f32 %v160, 255.0
        %v162 = vfloor.f32 %v161
        %v163 = vcvt.f32.s32.to.zero.pseudo %v162
        %s164 = scalar_lea.vmem %s133, 4 [#allocation2]
        %v165 = vld [vmem:[%s164] sm:$0x3]
        %v166 = vmul.f32 %v165, 255.0
        %v167 = vmax.f32 %v166, 0.0
        %v168 = vmin.f32 %v167, 255.0
        %v169 = vfloor.f32 %v168
        %v170 = vcvt.f32.s32.to.zero.pseudo %v169
        %v171 = vmul.u32 %v156, 4899
        %v172 = vmul.u32 %v163, 9617
        %v173 = vadd.s32 %v171, %v172
        %v174 = vmul.u32 %v170, 1868
        %v175 = vadd.s32 %v173, %v174
        %v176 = vadd.s32 %v175, 8192
        %v177 = vshra.s32 %v176, 14
        %v178 = vpack.c.b16 %v177, %v177
        %v179 = vpack.c.b8 %v178, %v178
        %vm180 = vcmask 1040384
        %vm181 = vsmask.f32 256
        %vm182 = vmand %vm180, %vm181
        %v183 = vld [vmem:[%s150] sm:$0x1]
        %v184 = vsel %vm182, %v179, %v183
        %185 = vst [vmem:[%s150] sm:$0x1] %v184
        %s186 = sand.u32 %s68, 1
        %s187 = scalar_lea.sflag [#allocation4], %s186
        %s188 = sand.u32 %s68, 1
        %s189 = scalar_lea.vmem [#allocation5], %s188
        // Predicated region
        $region29: #{tpu_custom_call.1} parent=23 // pred_check
          %p190 = pneg %p78
        $region30: #{tpu_custom_call.1} parent=23 // pred_check_branch
          %192 = sbr.rel (%p190) target = $region32
        $region31: #{tpu_custom_call.1} parent=23 // pred_region
          %s194 = ssub.s32 16, 16
          %195 = vsyncadd %s187, %s194
          %s196 = sadd.s32 %s23, %s22
          %s197 = smul.addr %s196, 16
          %s198 = scalar_lea.hbm %s1, %s197
          %s200 = sshll.u32 %s189, 4
          %s201 = int_to_ptr.vmem [resolvable:$true] %s200
          %203 = dma.vmem_to_hbm [thread:$0]  %s201, 16, %s198, %s187
        $region32: #{tpu_custom_call.1} parent=23 // pred_fallthru
          _
      $region24: #{tpu_custom_call.1} parent=5 // pred_fallthru
        _
      %p204 = scmp.le.s32.totalorder 2, %s13
      // Predicated region
      $region33: #{tpu_custom_call.1} parent=5 // pred_check
        %p205 = pneg %p204
      $region34: #{tpu_custom_call.1} parent=5 // pred_check_branch
        %207 = sbr.rel (%p205) target = $region36
      $region35: #{tpu_custom_call.1} parent=5 // pred_region
        %s208 = ssub.s32 %s13, 2
        // Predicated region
        $region37: #{tpu_custom_call.1} parent=35 // pred_check
          %p209 = pneg %p84
        $region38: #{tpu_custom_call.1} parent=35 // pred_check_branch
          %211 = sbr.rel (%p209) target = $region40
        $region39: #{tpu_custom_call.1} parent=35 // pred_region
          %s212 = sand.u32 %s69, 1
          %s213 = scalar_lea.sflag [#allocation4], %s212
          %s214 = sand.u32 %s69, 1
          %s215 = scalar_lea.vmem [#allocation5], %s214
          %216 = dma.done %s213, 16
        $region40: #{tpu_custom_call.1} parent=35 // pred_fallthru
          _
      $region36: #{tpu_custom_call.1} parent=5 // pred_fallthru
        _
    $region6: #{tpu_custom_call.1} parent=1 // loop_footer
      %s17 = sadd.s32 1, %s13
    $region7: #{tpu_custom_call.1} parent=1 // loop_footer_branch
      %12 = sbr.rel target = $region3
    $region8: #{tpu_custom_call.1} parent=1 // loop_exit
      _
    %217 = vsyncpa [#allocation3], 1
    %s218 = scalar_lea.sflag [#allocation3], 1
    %219 = vsyncpa %s218, 1
    %220 = vsyncpa [#allocation4], 1
    %s221 = scalar_lea.sflag [#allocation4], 1
    %222 = vsyncpa %s221, 1

</llo_original>
